<compile_context>
chip_gen: v7x
topology: tpu7x:2x2x1
jax: 0.10.0
libtpu: 0.0.40
codegen_flags: <defaults>
</compile_context>

<pallas_src>
import jax
import jax.numpy as jnp
from jax.experimental import pallas as pl
from jax.experimental.pallas import tpu as pltpu


def _average_net_kernel(xt_ref, w1t_ref, b1_ref, w2t_ref, b2_ref, ot_ref):
    # Fused forward for both subnets, transposed so batch is the lane axis.
    xt = xt_ref[...]                                                    # (D_in, tb)
    h = jnp.dot(w1t_ref[...], xt, preferred_element_type=jnp.float32)   # (2H, tb)
    h = jnp.maximum(h + b1_ref[...], 0.0)
    y = jnp.dot(w2t_ref[...], h, preferred_element_type=jnp.float32)    # (D_out, tb)
    ot_ref[...] = (y + b2_ref[...]).astype(ot_ref.dtype)


def _round_up(v, m):
    return ((v + m - 1) // m) * m


def average_net(x, avg_param_no_clip, net1_params, net2_params):
    """Pallas implementation of AverageNet.forward.

    x: (B, D_in) or (D_in,)
    net{1,2}_params: (W1 (D_in,H), b1 (H,), W2 (H,D_out), b2 (D_out,))
    """
    w1_1, b1_1, w2_1, b2_1 = net1_params
    w1_2, b1_2, w2_2, b2_2 = net2_params

    squeeze_back = x.ndim == 1
    if squeeze_back:
        x = x[None, :]
    x = x.astype(jnp.float32)

    batch, d_in = x.shape
    hidden = w1_1.shape[1]
    d_out = w2_1.shape[1]
    two_h = 2 * hidden

    # --- Fold the averaging weight into the second-layer weights (wrapper). ---
    a = jnp.clip(avg_param_no_clip.astype(jnp.float32), 0.0, 1.0)
    # Transposed weights: lane axis will be the batch axis inside the kernel.
    w1t = jnp.concatenate([w1_1, w1_2], axis=1).astype(jnp.float32).T        # (2H, D_in)
    b1c = jnp.concatenate([b1_1, b1_2], axis=0).astype(jnp.float32)[:, None]  # (2H, 1)
    w2t = jnp.concatenate([a * w2_1, (1.0 - a) * w2_2], axis=0).astype(jnp.float32).T  # (D_out, 2H)
    b2c = (a * b2_1 + (1.0 - a) * b2_2).astype(jnp.float32)[:, None]          # (D_out, 1)

    # --- Batch tiling: batch is the lane axis -> pad to a multiple of 128. ---
    if batch <= 128:
        tile_b = 128                     # single lane-aligned tile
    else:
        # >= 2 grid steps (both TCs on v7x), tile cap 1024 to amortize step overhead.
        tile_b = min(1024, _round_up(pl.cdiv(batch, 2), 128))
    b_pad = _round_up(batch, tile_b)

    xt = x.T                                                           # (D_in, B)
    if b_pad != batch:
        xt = jnp.pad(xt, ((0, 0), (0, b_pad - batch)))
    grid = (b_pad // tile_b,)

    flops = 2 * batch * (d_in * two_h + two_h * d_out)
    bytes_accessed = 4 * (batch * (d_in + d_out)
                          + two_h * (d_in + d_out) + two_h + d_out)

    out_t = pl.pallas_call(
        _average_net_kernel,
        out_shape=jax.ShapeDtypeStruct((d_out, b_pad), jnp.float32),
        grid=grid,
        in_specs=[
            pl.BlockSpec((d_in, tile_b), lambda i: (0, i)),    # X^T tile
            pl.BlockSpec((two_h, d_in), lambda i: (0, 0)),     # W1_all^T (resident)
            pl.BlockSpec((two_h, 1), lambda i: (0, 0)),        # b1 column
            pl.BlockSpec((d_out, two_h), lambda i: (0, 0)),    # W2_all^T (pre-scaled by a)
            pl.BlockSpec((d_out, 1), lambda i: (0, 0)),        # b2 column (pre-scaled)
        ],
        out_specs=pl.BlockSpec((d_out, tile_b), lambda i: (0, i)),
        compiler_params=pltpu.CompilerParams(
            dimension_semantics=("parallel",)),
        cost_estimate=pl.CostEstimate(
            flops=flops, transcendentals=0, bytes_accessed=bytes_accessed),
    )(xt, w1t, b1c, w2t, b2c)

    out = out_t.T[:batch]   # padded lanes hold bias/ReLU leakage -> slice them off
    if squeeze_back:
        out = out[0]
    return out


def _reference(x, avg_param_no_clip, net1_params, net2_params):
    if x.ndim == 1:
        x = x[None, :]
    a = jnp.clip(avg_param_no_clip.astype(jnp.float32), 0.0, 1.0)

    def mlp(x, w1, b1, w2, b2):
        h = jnp.maximum(x @ w1 + b1, 0.0)
        return h @ w2 + b2

    out1 = mlp(x, *net1_params)
    out2 = mlp(x, *net2_params)
    return a * out1 + (1.0 - a) * out2


if __name__ == "__main__":
    # Small, deterministic configuration.
    batch = 2
    d_in = 16
    hidden = 32
    d_out = 8

    key = jax.random.PRNGKey(0)
    kx, k11, k12, k13, k14, k21, k22, k23, k24 = jax.random.split(key, 9)

    x = jax.random.normal(kx, (batch, d_in), dtype=jnp.float32)

    # nn.Parameter(torch.tensor(0.5))
    avg_param_no_clip = jnp.asarray(0.5, dtype=jnp.float32)

    net1_params = (
        0.1 * jax.random.normal(k11, (d_in, hidden), dtype=jnp.float32),
        0.1 * jax.random.normal(k12, (hidden,), dtype=jnp.float32),
        0.1 * jax.random.normal(k13, (hidden, d_out), dtype=jnp.float32),
        0.1 * jax.random.normal(k14, (d_out,), dtype=jnp.float32),
    )
    net2_params = (
        0.1 * jax.random.normal(k21, (d_in, hidden), dtype=jnp.float32),
        0.1 * jax.random.normal(k22, (hidden,), dtype=jnp.float32),
        0.1 * jax.random.normal(k23, (hidden, d_out), dtype=jnp.float32),
        0.1 * jax.random.normal(k24, (d_out,), dtype=jnp.float32),
    )

    out = average_net(x, avg_param_no_clip, net1_params, net2_params)
    out = jax.block_until_ready(out)

    ref = _reference(x, avg_param_no_clip, net1_params, net2_params)
    assert out.shape == ref.shape, (out.shape, ref.shape)
    assert jnp.allclose(out, ref, atol=1e-5, rtol=1e-5), (
        "mismatch", float(jnp.max(jnp.abs(out - ref))))

    print("KERNEL_OK")
</pallas_src>

<mosaic_0001>
module attributes {stable_mosaic.version = 11 : i64} {
  func.func @_average_net_kernel(%arg0: i32, %arg1: memref<16x128xf32, #tpu.memory_space<vmem>>, %arg2: memref<64x16xf32, #tpu.memory_space<vmem>>, %arg3: memref<64x1xf32, #tpu.memory_space<vmem>>, %arg4: memref<8x64xf32, #tpu.memory_space<vmem>>, %arg5: memref<8x1xf32, #tpu.memory_space<vmem>>, %arg6: memref<8x128xf32, #tpu.memory_space<vmem>>) attributes {dimension_semantics = [#tpu.dimension_semantics<parallel>], iteration_bounds = array<i64: 1>, scalar_prefetch = 0 : i64, scratch_operands = 0 : i64, tpu.core_type = #tpu.core_type<tc>, window_params = [{transform_indices = @transform_0, window_bounds = array<i64: 16, 128>}, {pipeline_mode = #tpu.pipeline_mode<synchronous>, transform_indices = @transform_1, window_bounds = array<i64: 64, 16>}, {pipeline_mode = #tpu.pipeline_mode<synchronous>, transform_indices = @transform_2, window_bounds = array<i64: 64, 1>}, {pipeline_mode = #tpu.pipeline_mode<synchronous>, transform_indices = @transform_3, window_bounds = array<i64: 8, 64>}, {pipeline_mode = #tpu.pipeline_mode<synchronous>, transform_indices = @transform_4, window_bounds = array<i64: 8, 1>}, {transform_indices = @transform_5, window_bounds = array<i64: 8, 128>}]} {
    %c0 = arith.constant 0 : index
    %c0_0 = arith.constant 0 : index
    %0 = vector.load %arg1[%c0, %c0_0] : memref<16x128xf32, #tpu.memory_space<vmem>>, vector<16x128xf32>
    %c0_1 = arith.constant 0 : index
    %c0_2 = arith.constant 0 : index
    %1 = vector.load %arg2[%c0_1, %c0_2] : memref<64x16xf32, #tpu.memory_space<vmem>>, vector<64x16xf32>
    %cst = arith.constant dense<0.000000e+00> : vector<64x128xf32>
    %2 = tpu.matmul %1, %0, %cst {dimension_numbers = #tpu.dot_dimension_numbers<[1], [0], [0], [1], [0, 0, 1, 1], [], []>} : vector<64x16xf32>, vector<16x128xf32>, vector<64x128xf32> -> vector<64x128xf32>
    %c0_3 = arith.constant 0 : index
    %c0_4 = arith.constant 0 : index
    %3 = vector.load %arg3[%c0_3, %c0_4] : memref<64x1xf32, #tpu.memory_space<vmem>>, vector<64x1xf32>
    %4 = vector.broadcast %3 : vector<64x1xf32> to vector<64x128xf32>
    %5 = arith.addf %2, %4 : vector<64x128xf32>
    %cst_5 = arith.constant 0.000000e+00 : f32
    %6 = vector.broadcast %cst_5 : f32 to vector<64x128xf32>
    %7 = arith.maximumf %5, %6 : vector<64x128xf32>
    %c0_6 = arith.constant 0 : index
    %c0_7 = arith.constant 0 : index
    %8 = vector.load %arg4[%c0_6, %c0_7] : memref<8x64xf32, #tpu.memory_space<vmem>>, vector<8x64xf32>
    %cst_8 = arith.constant dense<0.000000e+00> : vector<8x128xf32>
    %9 = tpu.matmul %8, %7, %cst_8 {dimension_numbers = #tpu.dot_dimension_numbers<[1], [0], [0], [1], [0, 0, 1, 1], [], []>} : vector<8x64xf32>, vector<64x128xf32>, vector<8x128xf32> -> vector<8x128xf32>
    %c0_9 = arith.constant 0 : index
    %c0_10 = arith.constant 0 : index
    %10 = vector.load %arg5[%c0_9, %c0_10] : memref<8x1xf32, #tpu.memory_space<vmem>>, vector<8x1xf32>
    %11 = vector.broadcast %10 : vector<8x1xf32> to vector<8x128xf32>
    %12 = arith.addf %9, %11 : vector<8x128xf32>
    %c0_11 = arith.constant 0 : index
    %c0_12 = arith.constant 0 : index
    %13 = vector.load %arg6[%c0_11, %c0_12] : memref<8x128xf32, #tpu.memory_space<vmem>>, vector<8x128xf32>
    tpu.vector_store %arg6[%c0_11, %c0_12], %12 {strides = array<i32>} : memref<8x128xf32, #tpu.memory_space<vmem>>, vector<8x128xf32>,
    return
  }
  func.func @transform_0(%arg0: i32) -> (i32, i32) {
    %c0_i32 = arith.constant 0 : i32
    %c0_i32_0 = arith.constant 0 : i32
    return %c0_i32, %arg0 : i32, i32
  }
  func.func @transform_1(%arg0: i32) -> (i32, i32) {
    %c0_i32 = arith.constant 0 : i32
    %c0_i32_0 = arith.constant 0 : i32
    %c0_i32_1 = arith.constant 0 : i32
    return %c0_i32, %c0_i32_0 : i32, i32
  }
  func.func @transform_2(%arg0: i32) -> (i32, i32) {
    %c0_i32 = arith.constant 0 : i32
    %c0_i32_0 = arith.constant 0 : i32
    %c0_i32_1 = arith.constant 0 : i32
    return %c0_i32, %c0_i32_0 : i32, i32
  }
  func.func @transform_3(%arg0: i32) -> (i32, i32) {
    %c0_i32 = arith.constant 0 : i32
    %c0_i32_0 = arith.constant 0 : i32
    %c0_i32_1 = arith.constant 0 : i32
    return %c0_i32, %c0_i32_0 : i32, i32
  }
  func.func @transform_4(%arg0: i32) -> (i32, i32) {
    %c0_i32 = arith.constant 0 : i32
    %c0_i32_0 = arith.constant 0 : i32
    %c0_i32_1 = arith.constant 0 : i32
    return %c0_i32, %c0_i32_0 : i32, i32
  }
  func.func @transform_5(%arg0: i32) -> (i32, i32) {
    %c0_i32 = arith.constant 0 : i32
    %c0_i32_0 = arith.constant 0 : i32
    return %c0_i32, %arg0 : i32, i32
  }
}

</mosaic_0001>

<llo_original>
// kernel: tpu_custom_call.1
$region0: #{tpu_custom_call.1}
  #allocation0 [shape = 'u32[]', space=smem, size = 0x4, offset = 0x4, fixed_abs, tag = 'smem constant byte address 0x4 - core index']
  #allocation1 [shape = 'u32[144,128]{1,0:T(1,128)}', space=vmem, size = 0x12000, scoped, tag = 'internal scratch']
  %s0 = inlined_call_operand.vmem [shape: f32[16,128], index: 0, kind: input, shape index: {}]
  %s1 = inlined_call_operand.vmem [shape: f32[64,16], index: 1, kind: input, shape index: {}]
  %s2 = inlined_call_operand.vmem [shape: f32[64,1], index: 2, kind: input, shape index: {}]
  %s3 = inlined_call_operand.vmem [shape: f32[8,64], index: 3, kind: input, shape index: {}]
  %s4 = inlined_call_operand.vmem [shape: f32[8,1], index: 4, kind: input, shape index: {}]
  %s5 = inlined_call_operand.hbm [shape: f32[8,128], index: 5, kind: output, shape index: {}]
  %s6 = sld [smem:[#allocation0]]
  $region30: #{tpu_custom_call.1} parent=0
    _
  %s8 = ssub.s32 1, %s6
  %s9 = scalar_select 0, %s8, %s6
  $region1: #{tpu_custom_call.1} parent=0
    #allocation2 [shape = 'u8[4096]{0}', space=vmem, size = 0x1000, scoped, tag = 'output window, operand 0, single buffered']
    #allocation3 [shape = 's32[1]{0}', space=sflag, size = 0x4, scoped, tag = 'scoped memory for tpu_custom_call.1']
    %10 = vsyncpa [#allocation3], 0
    // Predicated region
    $region2: #{tpu_custom_call.1} parent=1 // pred_check
      _
    $region3: #{tpu_custom_call.1} parent=1 // pred_check_branch
      %12 = sbr.rel (0) target = $region5
    $region4: #{tpu_custom_call.1} parent=1 // pred_region
      _
    $region5: #{tpu_custom_call.1} parent=1 // pred_fallthru
      _
    // Predicated region
    $region6: #{tpu_custom_call.1} parent=1 // pred_check
      _
    $region7: #{tpu_custom_call.1} parent=1 // pred_check_branch
      %14 = sbr.rel (0) target = $region9
    $region8: #{tpu_custom_call.1} parent=1 // pred_region
      _
    $region9: #{tpu_custom_call.1} parent=1 // pred_fallthru
      _
    // Predicated region
    $region10: #{tpu_custom_call.1} parent=1 // pred_check
      _
    $region11: #{tpu_custom_call.1} parent=1 // pred_check_branch
      %16 = sbr.rel (0) target = $region13
    $region12: #{tpu_custom_call.1} parent=1 // pred_region
      _
    $region13: #{tpu_custom_call.1} parent=1 // pred_fallthru
      _
    // Predicated region
    $region14: #{tpu_custom_call.1} parent=1 // pred_check
      _
    $region15: #{tpu_custom_call.1} parent=1 // pred_check_branch
      %18 = sbr.rel (0) target = $region17
    $region16: #{tpu_custom_call.1} parent=1 // pred_region
      _
    $region17: #{tpu_custom_call.1} parent=1 // pred_fallthru
      _
    // Predicated region
    $region18: #{tpu_custom_call.1} parent=1 // pred_check
      _
    $region19: #{tpu_custom_call.1} parent=1 // pred_check_branch
      %20 = sbr.rel (0) target = $region21
    $region20: #{tpu_custom_call.1} parent=1 // pred_region
      _
    $region21: #{tpu_custom_call.1} parent=1 // pred_fallthru
      _
    %v21 = vld [vmem:[%s0] sm:$0xff]
    %v22 = vld [vmem:[%s0 + $0x8] sm:$0xff]
    %v23 = vld [vmem:[%s1] sm:$0xff]
    %v24 = vld [vmem:[%s1 + $0x8] sm:$0xff]
    %v25 = vld [vmem:[%s1 + $0x10] sm:$0xff]
    %v26 = vld [vmem:[%s1 + $0x18] sm:$0xff]
    %v27 = vld [vmem:[%s1 + $0x20] sm:$0xff]
    %v28 = vld [vmem:[%s1 + $0x28] sm:$0xff]
    %v29 = vld [vmem:[%s1 + $0x30] sm:$0xff]
    %v30 = vld [vmem:[%s1 + $0x38] sm:$0xff]
    %v31 = vld [vmem:[%s2] sm:$0xff]
    %v32 = vld [vmem:[%s2 + $0x8] sm:$0xff]
    %v33 = vld [vmem:[%s2 + $0x10] sm:$0xff]
    %v34 = vld [vmem:[%s2 + $0x18] sm:$0xff]
    %v35 = vld [vmem:[%s2 + $0x20] sm:$0xff]
    %v36 = vld [vmem:[%s2 + $0x28] sm:$0xff]
    %v37 = vld [vmem:[%s2 + $0x30] sm:$0xff]
    %v38 = vld [vmem:[%s2 + $0x38] sm:$0xff]
    %40 = vset.pattern.permute.xlu0 0
    %41 = vperm.xlu0 %40, %v31
    %v42 = vpop.permute.xlu0 %41
    %45 = vset.pattern.permute.xlu0 0
    %46 = vperm.xlu0 %45, %v32
    %v47 = vpop.permute.xlu0 %46
    %50 = vset.pattern.permute.xlu0 0
    %51 = vperm.xlu0 %50, %v33
    %v52 = vpop.permute.xlu0 %51
    %55 = vset.pattern.permute.xlu0 0
    %56 = vperm.xlu0 %55, %v34
    %v57 = vpop.permute.xlu0 %56
    %60 = vset.pattern.permute.xlu0 0
    %61 = vperm.xlu0 %60, %v35
    %v62 = vpop.permute.xlu0 %61
    %65 = vset.pattern.permute.xlu0 0
    %66 = vperm.xlu0 %65, %v36
    %v67 = vpop.permute.xlu0 %66
    %70 = vset.pattern.permute.xlu0 0
    %71 = vperm.xlu0 %70, %v37
    %v72 = vpop.permute.xlu0 %71
    %75 = vset.pattern.permute.xlu0 0
    %76 = vperm.xlu0 %75, %v38
    %v77 = vpop.permute.xlu0 %76
    %vm79 = vcmask 130048
    %v81 = vsel %vm79, %v23, 0
    %v84 = vsel %vm79, %v24, 0
    %v87 = vsel %vm79, %v25, 0
    %v90 = vsel %vm79, %v26, 0
    %v93 = vsel %vm79, %v27, 0
    %v96 = vsel %vm79, %v28, 0
    %v99 = vsel %vm79, %v29, 0
    %v102 = vsel %vm79, %v30, 0
    %104 = vmatprep.subr.mxu0 0.0
    %105 = vmatpush1.msra.mxu0 %v21
    %106 = vmatprep.subr.mxu0 0.0
    %107 = vmatpush1.msra.mxu0 %v22
    %108 = vmatprep.subr.mxu0 0.0
    %109 = vmatpush1.msra.mxu0 0.0
    %110 = vmatprep.subr.mxu0 0.0
    %111 = vmatpush1.msra.mxu0 0.0
    %112 = vmatprep.subr.mxu0 0.0
    %113 = vmatpush1.msra.mxu0 0.0
    %114 = vmatprep.subr.mxu0 0.0
    %115 = vmatpush1.msra.mxu0 0.0
    %116 = vmatprep.subr.mxu0 0.0
    %117 = vmatpush1.msra.mxu0 0.0
    %118 = vmatprep.subr.mxu0 0.0
    %119 = vmatpush1.msra.mxu0 0.0
    %120 = vmatprep.subr.mxu0 0.0
    %121 = vmatpush1.msra.mxu0 0.0
    %122 = vmatprep.subr.mxu0 0.0
    %123 = vmatpush1.msra.mxu0 0.0
    %124 = vmatprep.subr.mxu0 0.0
    %125 = vmatpush1.msra.mxu0 0.0
    %126 = vmatprep.subr.mxu0 0.0
    %127 = vmatpush1.msra.mxu0 0.0
    %128 = vmatprep.subr.mxu0 0.0
    %129 = vmatpush1.msra.mxu0 0.0
    %130 = vmatprep.subr.mxu0 0.0
    %131 = vmatpush1.msra.mxu0 0.0
    %132 = vmatprep.subr.mxu0 0.0
    %133 = vmatpush1.msra.mxu0 0.0
    %134 = vmatprep.subr.mxu0 0.0
    %135 = vmatpush1.msra.mxu0 0.0
    %136 = vmatprep.subr.mxu0 0.0
    %137 = vmatpush1.msra.mxu0 0.0
    %138 = vmatprep.subr.mxu0 0.0
    %139 = vmatpush1.msra.mxu0 0.0
    %140 = vmatprep.subr.mxu0 0.0
    %141 = vmatpush1.msra.mxu0 0.0
    %142 = vmatprep.subr.mxu0 0.0
    %143 = vmatpush1.msra.mxu0 0.0
    %144 = vmatprep.subr.mxu0 0.0
    %145 = vmatpush1.msra.mxu0 0.0
    %146 = vmatprep.subr.mxu0 0.0
    %147 = vmatpush1.msra.mxu0 0.0
    %148 = vmatprep.subr.mxu0 0.0
    %149 = vmatpush1.msra.mxu0 0.0
    %150 = vmatprep.subr.mxu0 0.0
    %151 = vmatpush1.msra.mxu0 0.0
    %152 = vmatprep.subr.mxu0 0.0
    %153 = vmatpush1.msra.mxu0 0.0
    %154 = vmatprep.subr.mxu0 0.0
    %155 = vmatpush1.msra.mxu0 0.0
    %156 = vmatprep.subr.mxu0 0.0
    %157 = vmatpush1.msra.mxu0 0.0
    %158 = vmatprep.subr.mxu0 0.0
    %159 = vmatpush1.msra.mxu0 0.0
    %160 = vmatprep.subr.mxu0 0.0
    %161 = vmatpush1.msra.mxu0 0.0
    %162 = vmatprep.subr.mxu0 0.0
    %163 = vmatpush1.msra.mxu0 0.0
    %164 = vmatprep.subr.mxu0 0.0
    %165 = vmatpush1.msra.mxu0 0.0
    %166 = vmatprep.subr.mxu0 0.0
    %167 = vmatpush1.msra.mxu0 0.0
    %168 = vmatprep.mubr.f32.mxu0 0.0
    %169 = vmatmul.mubr.f32.gmra.mrb[0].mxu0 %v81
    %v170 = vpop.f32.mrb[0].mxu0
    %v171 = vadd.f32 %v42, %v170
    %v172 = vpop.f32.mrb[0].mxu0
    %173 = vmatprep.mubr.f32.mxu0 0.0
    %174 = vmatmul.mubr.f32.gmra.mrb[0].mxu0 %v84
    %v175 = vpop.f32.mrb[0].mxu0
    %v176 = vadd.f32 %v47, %v175
    %v177 = vpop.f32.mrb[0].mxu0
    %178 = vmatprep.mubr.f32.mxu0 0.0
    %179 = vmatmul.mubr.f32.gmra.mrb[0].mxu0 %v87
    %v180 = vpop.f32.mrb[0].mxu0
    %v181 = vadd.f32 %v52, %v180
    %v182 = vpop.f32.mrb[0].mxu0
    %183 = vmatprep.mubr.f32.mxu0 0.0
    %184 = vmatmul.mubr.f32.gmra.mrb[0].mxu0 %v90
    %v185 = vpop.f32.mrb[0].mxu0
    %v186 = vadd.f32 %v57, %v185
    %v187 = vpop.f32.mrb[0].mxu0
    %188 = vmatprep.mubr.f32.mxu0 0.0
    %189 = vmatmul.mubr.f32.gmra.mrb[0].mxu0 %v93
    %v190 = vpop.f32.mrb[0].mxu0
    %v191 = vadd.f32 %v62, %v190
    %v192 = vpop.f32.mrb[0].mxu0
    %193 = vmatprep.mubr.f32.mxu0 0.0
    %194 = vmatmul.mubr.f32.gmra.mrb[0].mxu0 %v96
    %v195 = vpop.f32.mrb[0].mxu0
    %v196 = vadd.f32 %v67, %v195
    %v197 = vpop.f32.mrb[0].mxu0
    %198 = vmatprep.mubr.f32.mxu0 0.0
    %199 = vmatmul.mubr.f32.gmra.mrb[0].mxu0 %v99
    %v200 = vpop.f32.mrb[0].mxu0
    %v201 = vadd.f32 %v72, %v200
    %v202 = vpop.f32.mrb[0].mxu0
    %203 = vmatprep.mubr.f32.mxu0 0.0
    %204 = vmatmul.mubr.f32.gmra.mrb[0].mxu0 %v102
    %v205 = vpop.f32.mrb[0].mxu0
    %v206 = vadd.f32 %v77, %v205
    %v207 = vpop.f32.mrb[0].mxu0
    %208 = vdwg.mxu0
    %v209 = vmax.f32 %v171, 0.0
    %v210 = vmax.f32 %v176, 0.0
    %v211 = vmax.f32 %v181, 0.0
    %v212 = vmax.f32 %v186, 0.0
    %v213 = vmax.f32 %v191, 0.0
    %v214 = vmax.f32 %v196, 0.0
    %v215 = vmax.f32 %v201, 0.0
    %v216 = vmax.f32 %v206, 0.0
    %v217 = vld [vmem:[%s3] sm:$0xff]
    %v218 = vld [vmem:[%s4] sm:$0xff]
    %220 = vset.pattern.permute.xlu0 0
    %221 = vperm.xlu0 %220, %v218
    %v222 = vpop.permute.xlu0 %221
    %vm224 = vcmask 523264
    %v226 = vsel %vm224, %v217, 0
    %228 = vmatprep.subr.mxu0 0.0
    %229 = vmatpush1.msra.mxu0 %v209
    %230 = vmatprep.subr.mxu0 0.0
    %231 = vmatpush1.msra.mxu0 %v210
    %232 = vmatprep.subr.mxu0 0.0
    %233 = vmatpush1.msra.mxu0 %v211
    %234 = vmatprep.subr.mxu0 0.0
    %235 = vmatpush1.msra.mxu0 %v212
    %236 = vmatprep.subr.mxu0 0.0
    %237 = vmatpush1.msra.mxu0 %v213
    %238 = vmatprep.subr.mxu0 0.0
    %239 = vmatpush1.msra.mxu0 %v214
    %240 = vmatprep.subr.mxu0 0.0
    %241 = vmatpush1.msra.mxu0 %v215
    %242 = vmatprep.subr.mxu0 0.0
    %243 = vmatpush1.msra.mxu0 %v216
    %244 = vmatprep.subr.mxu0 0.0
    %245 = vmatpush1.msra.mxu0 0.0
    %246 = vmatprep.subr.mxu0 0.0
    %247 = vmatpush1.msra.mxu0 0.0
    %248 = vmatprep.subr.mxu0 0.0
    %249 = vmatpush1.msra.mxu0 0.0
    %250 = vmatprep.subr.mxu0 0.0
    %251 = vmatpush1.msra.mxu0 0.0
    %252 = vmatprep.subr.mxu0 0.0
    %253 = vmatpush1.msra.mxu0 0.0
    %254 = vmatprep.subr.mxu0 0.0
    %255 = vmatpush1.msra.mxu0 0.0
    %256 = vmatprep.subr.mxu0 0.0
    %257 = vmatpush1.msra.mxu0 0.0
    %258 = vmatprep.subr.mxu0 0.0
    %259 = vmatpush1.msra.mxu0 0.0
    %260 = vmatprep.subr.mxu0 0.0
    %261 = vmatpush1.msra.mxu0 0.0
    %262 = vmatprep.subr.mxu0 0.0
    %263 = vmatpush1.msra.mxu0 0.0
    %264 = vmatprep.subr.mxu0 0.0
    %265 = vmatpush1.msra.mxu0 0.0
    %266 = vmatprep.subr.mxu0 0.0
    %267 = vmatpush1.msra.mxu0 0.0
    %268 = vmatprep.subr.mxu0 0.0
    %269 = vmatpush1.msra.mxu0 0.0
    %270 = vmatprep.subr.mxu0 0.0
    %271 = vmatpush1.msra.mxu0 0.0
    %272 = vmatprep.subr.mxu0 0.0
    %273 = vmatpush1.msra.mxu0 0.0
    %274 = vmatprep.subr.mxu0 0.0
    %275 = vmatpush1.msra.mxu0 0.0
    %276 = vmatprep.subr.mxu0 0.0
    %277 = vmatpush1.msra.mxu0 0.0
    %278 = vmatprep.subr.mxu0 0.0
    %279 = vmatpush1.msra.mxu0 0.0
    %280 = vmatprep.subr.mxu0 0.0
    %281 = vmatpush1.msra.mxu0 0.0
    %282 = vmatprep.subr.mxu0 0.0
    %283 = vmatpush1.msra.mxu0 0.0
    %284 = vmatprep.subr.mxu0 0.0
    %285 = vmatpush1.msra.mxu0 0.0
    %286 = vmatprep.subr.mxu0 0.0
    %287 = vmatpush1.msra.mxu0 0.0
    %288 = vmatprep.subr.mxu0 0.0
    %289 = vmatpush1.msra.mxu0 0.0
    %290 = vmatprep.subr.mxu0 0.0
    %291 = vmatpush1.msra.mxu0 0.0
    %292 = vmatprep.mubr.f32.mxu0 0.0
    %293 = vmatmul.mubr.f32.gmra.mrb[0].mxu0 %v226
    %v294 = vpop.f32.mrb[0].mxu0
    %v295 = vadd.f32 %v222, %v294
    %v296 = vpop.f32.mrb[0].mxu0
    %297 = vdwg.mxu0
    %298 = vst [vmem:[#allocation2] sm:$0xff] %v295
    // Predicated region
    $region22: #{tpu_custom_call.1} parent=1 // pred_check
      _
    $region23: #{tpu_custom_call.1} parent=1 // pred_check_branch
      %300 = sbr.rel (0) target = $region25
    $region24: #{tpu_custom_call.1} parent=1 // pred_region
      %s302 = ssub.s32 128, 128
      %303 = vsyncadd [#allocation3], %s302
      %s305 = sshll.u32 [#allocation2], 4
      %s306 = int_to_ptr.vmem [resolvable:$true] %s305
      %308 = dma.vmem_to_hbm [thread:$0]  %s306, 128, %s5, [#allocation3]
    $region25: #{tpu_custom_call.1} parent=1 // pred_fallthru
      _
    // Predicated region
    $region26: #{tpu_custom_call.1} parent=1 // pred_check
      _
    $region27: #{tpu_custom_call.1} parent=1 // pred_check_branch
      %310 = sbr.rel (0) target = $region29
    $region28: #{tpu_custom_call.1} parent=1 // pred_region
      %311 = dma.done [#allocation3], 128
    $region29: #{tpu_custom_call.1} parent=1 // pred_fallthru
      _
    %312 = vsyncpa [#allocation3], 1

</llo_original>
